<compile_context>
chip_gen: v5e
topology: v5e:2x2
jax: 0.10.0
libtpu: 0.0.40
codegen_flags: <defaults>
</compile_context>

<pallas_src>
from typing import NamedTuple, Optional

import jax
import jax.numpy as jnp
from jax.experimental import pallas as pl
from jax.experimental.pallas import tpu as pltpu


def _round_up(x: int, m: int) -> int:
    return (x + m - 1) // m * m


def _row_align(*dtypes) -> int:
    # Sub-32-bit dtypes pack along sublanes: native second-minor tile is
    # 8 * (4 / itemsize) rows (8 for f32, 16 for bf16, 32 for int8/fp8).
    return max(8 * max(1, 4 // jnp.dtype(d).itemsize) for d in dtypes)


def _choose_tm(bsz: int, block_m: int, row_align: int, min_tiles: int) -> int:
    """Batch tile: balanced across >= min_tiles tiles, sublane-aligned, <= block_m."""
    block_m = max(row_align, block_m // row_align * row_align)
    if bsz <= row_align * min_tiles:           # too small to split usefully
        return min(_round_up(bsz, row_align), block_m)
    num_tiles = max(min_tiles, pl.cdiv(bsz, block_m))
    tm = _round_up(pl.cdiv(bsz, num_tiles), row_align)
    return min(tm, block_m)


class ActEncoderParams(NamedTuple):
    """Pre-packed Linear parameters (pack ONCE at init, not every forward)."""
    w1: jax.Array      # (rnn_hid_dim, out_p)  rows of W.T multiplying enc_h
    w2: jax.Array      # (ctx_emb_dim, out_p)  rows of W.T multiplying ctx_emb
    b2d: jax.Array     # (1, out_p) float32
    out_dim: int       # un-padded output features (rnn_hid_dim)


def pack_act_encoder_params(weight, bias, rnn_hid_dim, *,
                            compute_dtype=jnp.bfloat16) -> ActEncoderParams:
    """Pack nn.Linear params (PyTorch layout: weight (out, in), bias (out,)).

    Splits W.T at rnn_hid_dim (fuses the concat into two accumulating dots),
    pads the output features to a multiple of 128 lanes, and casts the weights
    to the MXU compute dtype.  Call this once at module init.
    """
    out_dim, in_dim = weight.shape
    assert bias.shape == (out_dim,)
    assert in_dim > rnn_hid_dim, "weight in_features must equal rnn_hid + ctx_emb"

    wt = jnp.asarray(weight).T                        # (in_dim, out_dim): x @ wt
    bias = jnp.asarray(bias, jnp.float32)
    out_p = _round_up(out_dim, 128)
    n_pad = out_p - out_dim
    if n_pad:
        wt = jnp.pad(wt, ((0, 0), (0, n_pad)))
        bias = jnp.pad(bias, (0, n_pad))
    if compute_dtype is not None:                     # None => strict f32 MXU path
        wt = wt.astype(compute_dtype)
    return ActEncoderParams(wt[:rnn_hid_dim], wt[rnn_hid_dim:],
                            bias.reshape(1, out_p), out_dim)


def _act_encoder_kernel(h_ref, c_ref, w1_ref, w2_ref, b_ref, o_ref):
    # h_ref: (TM, H)  c_ref: (TM, C)  w1_ref: (H, Np)  w2_ref: (C, Np)
    # b_ref: (1, Np)  o_ref: (TM, Np)
    # Concat fused away: x @ W == enc_h @ W1 + ctx_emb @ W2.  Cast activations
    # to the weight compute dtype in-register (no-op if producer already emits
    # bf16); accumulate in f32; f32 bias + ReLU epilogue; cast only at the store.
    h = h_ref[...].astype(w1_ref.dtype)
    c = c_ref[...].astype(w2_ref.dtype)
    acc = jnp.dot(h, w1_ref[...], preferred_element_type=jnp.float32)
    acc = acc + jnp.dot(c, w2_ref[...], preferred_element_type=jnp.float32)
    acc = acc + b_ref[...]
    acc = jnp.maximum(acc, 0.0)
    # TODO(synk): training-mode Dropout (stochastic mask via pltpu.prng_seed /
    # pltpu.prng_random_bits) not implemented; inference Dropout is the identity.
    o_ref[...] = acc.astype(o_ref.dtype)


def continuous_act_encoder(enc_h, ctx_emb, params: ActEncoderParams, *,
                           block_m: int = 512,
                           out_dtype=None,
                           min_batch_tiles: int = 2,
                           weight_buffer_count: Optional[int] = None,
                           vmem_limit_bytes: Optional[int] = None):
    """Pallas forward for the ContinuousActEncoder.

    Args:
      enc_h:   (bsz, rnn_hid_dim)  f32 or bf16.
      ctx_emb: (bsz, ctx_emb_dim)  f32 or bf16.
      params:  pre-packed weights from pack_act_encoder_params().
      block_m: max rows per batch tile (512 ~ 85% of HBM roofline on v6e).
      out_dtype: output dtype; pass jnp.bfloat16 to halve store traffic when
        the consumer accepts it.  None => match enc_h.dtype.
      min_batch_tiles: lower bound on grid size so the "parallel" axis can
        shard across v7x's two TensorCores.
      weight_buffer_count: set to 1 on v7x-sized weight stacks to single-buffer
        the VMEM-resident weights/bias (halves their resident footprint).
      vmem_limit_bytes: override the derived scoped-VMEM limit.

    Returns:
      (out, 0) with out shape (bsz, rnn_hid_dim), matching the PyTorch module.
    """
    w1, w2, b2d, out_dim = params
    bsz, h_dim = enc_h.shape
    bsz_c, c_dim = ctx_emb.shape
    assert bsz == bsz_c
    assert w1.shape[0] == h_dim and w2.shape[0] == c_dim
    out_p = w1.shape[1]
    out_dtype = jnp.dtype(enc_h.dtype if out_dtype is None else out_dtype)

    row_align = _row_align(enc_h.dtype, ctx_emb.dtype, out_dtype)
    tm = _choose_tm(bsz, block_m, row_align, min_batch_tiles)
    grid = (pl.cdiv(bsz, tm),)
    # Ragged last block: Pallas masks out-of-range reads/writes, so no host-side
    # batch padding and no post-kernel row slice are needed.

    # VMEM budget: v5e default scope is only 16 MiB; v7x physical VMEM is 64 MiB.
    w_bufs = 1 if weight_buffer_count == 1 else 2
    weight_bytes = w_bufs * (w1.size * w1.dtype.itemsize
                             + w2.size * w2.dtype.itemsize
                             + b2d.size * b2d.dtype.itemsize)
    act_bytes = 2 * tm * (h_dim * jnp.dtype(enc_h.dtype).itemsize
                          + c_dim * jnp.dtype(ctx_emb.dtype).itemsize)
    out_bytes = 2 * tm * out_p * out_dtype.itemsize
    acc_bytes = 4 * tm * out_p                       # f32 epilogue temporaries
    if vmem_limit_bytes is None:
        need = int(1.25 * (weight_bytes + act_bytes + out_bytes + acc_bytes))
        vmem_limit_bytes = min(max(need, 32 << 20), 64 << 20)

    # Constant index maps keep W1/W2/bias VMEM-resident across all batch tiles;
    # weight_buffer_count=1 additionally single-buffers them (v7x VMEM budget).
    w_kwargs = ({} if weight_buffer_count is None
                else dict(pipeline_mode=pl.Buffered(weight_buffer_count)))

    itemsize = lambda a: a.size * a.dtype.itemsize
    cost = pl.CostEstimate(
        flops=2 * bsz * (h_dim + c_dim) * out_p,
        transcendentals=0,
        bytes_accessed=(itemsize(enc_h) + itemsize(ctx_emb) + itemsize(w1)
                        + itemsize(w2) + itemsize(b2d)
                        + bsz * out_p * out_dtype.itemsize),
    )

    out = pl.pallas_call(
        _act_encoder_kernel,
        out_shape=jax.ShapeDtypeStruct((bsz, out_p), out_dtype),
        grid=grid,
        in_specs=[
            pl.BlockSpec((tm, h_dim), lambda i: (i, 0)),                 # enc_h tile
            pl.BlockSpec((tm, c_dim), lambda i: (i, 0)),                 # ctx_emb tile
            pl.BlockSpec((h_dim, out_p), lambda i: (0, 0), **w_kwargs),  # W1 (resident)
            pl.BlockSpec((c_dim, out_p), lambda i: (0, 0), **w_kwargs),  # W2 (resident)
            pl.BlockSpec((1, out_p), lambda i: (0, 0), **w_kwargs),      # bias (resident)
        ],
        out_specs=pl.BlockSpec((tm, out_p), lambda i: (i, 0)),
        compiler_params=pltpu.CompilerParams(
            dimension_semantics=("parallel",),      # batch tiles shard across TCs
            vmem_limit_bytes=int(vmem_limit_bytes)),
        cost_estimate=cost,
    )(enc_h, ctx_emb, w1, w2, b2d)

    if out_p != out_dim:                 # strip lane padding only if it was added
        out = out[:, :out_dim]
    return out, 0


if __name__ == "__main__":
    # Small shapes consistent with the module's forward; at these toy sizes the
    # pallas_call is pure launch overhead and the tiling only pays off at
    # production batch / feature sizes.
    rnn_hid_dim = 32
    ctx_emb_dim = 32
    in_dim = rnn_hid_dim + ctx_emb_dim

    key = jax.random.PRNGKey(0)
    k1, k2, k3, k4, k5, k6, k7 = jax.random.split(key, 7)

    # nn.Linear(rnn_hid + ctx_emb, rnn_hid) parameters, PyTorch layout (out, in).
    weight = jax.random.normal(k3, (rnn_hid_dim, in_dim), jnp.float32) * 0.05
    bias = jax.random.normal(k4, (rnn_hid_dim,), jnp.float32) * 0.05

    # Pack once at init (transpose / split / 128-lane pad / bf16 cast hoisted
    # out of the forward path).
    params = pack_act_encoder_params(weight, bias, rnn_hid_dim)

    def reference(enc_h, ctx_emb):
        # Same bf16-operand / f32-accumulate recipe as the kernel.
        wt = weight.T.astype(jnp.bfloat16)
        y = (jnp.dot(enc_h.astype(jnp.bfloat16), wt[:rnn_hid_dim],
                     preferred_element_type=jnp.float32)
             + jnp.dot(ctx_emb.astype(jnp.bfloat16), wt[rnn_hid_dim:],
                       preferred_element_type=jnp.float32)
             + bias)
        return jnp.maximum(y, 0.0)

    # Case 1: small batch, single tile, f32 output.
    bsz = 8
    enc_h = jax.random.normal(k1, (bsz, rnn_hid_dim), jnp.float32)
    ctx_emb = jax.random.normal(k2, (bsz, ctx_emb_dim), jnp.float32)
    out, zero = continuous_act_encoder(enc_h, ctx_emb, params)
    out = jax.block_until_ready(out)
    ref = reference(enc_h, ctx_emb)
    assert out.shape == (bsz, rnn_hid_dim) and zero == 0
    assert jnp.allclose(out, ref, atol=1e-3, rtol=1e-3), float(
        jnp.max(jnp.abs(out - ref)))

    # Case 2: ragged batch (20 rows -> two 16-row tiles, masked last block,
    # no host-side padding and no output row slicing).
    bsz2 = 20
    enc_h2 = jax.random.normal(k5, (bsz2, rnn_hid_dim), jnp.float32)
    ctx_emb2 = jax.random.normal(k6, (bsz2, ctx_emb_dim), jnp.float32)
    out2, _ = continuous_act_encoder(enc_h2, ctx_emb2, params)
    out2 = jax.block_until_ready(out2)
    ref2 = reference(enc_h2, ctx_emb2)
    assert out2.shape == (bsz2, rnn_hid_dim)
    assert jnp.allclose(out2, ref2, atol=1e-3, rtol=1e-3), float(
        jnp.max(jnp.abs(out2 - ref2)))

    # Case 3: bf16 output (halves the store stream when the consumer allows it).
    bsz3 = 16
    enc_h3 = jax.random.normal(k7, (bsz3, rnn_hid_dim), jnp.float32)
    ctx_emb3 = jax.random.normal(k2, (bsz3, ctx_emb_dim), jnp.float32)
    out3, _ = continuous_act_encoder(enc_h3, ctx_emb3, params,
                                     out_dtype=jnp.bfloat16)
    out3 = jax.block_until_ready(out3)
    ref3 = reference(enc_h3, ctx_emb3)
    assert out3.dtype == jnp.bfloat16 and out3.shape == (bsz3, rnn_hid_dim)
    assert jnp.allclose(out3.astype(jnp.float32), ref3, atol=1e-2, rtol=1e-2)

    print("KERNEL_OK")
</pallas_src>

<mosaic_0001>
module attributes {stable_mosaic.version = 11 : i64} {
  func.func @_act_encoder_kernel(%arg0: i32, %arg1: memref<8x32xf32, #tpu.memory_space<vmem>>, %arg2: memref<8x32xf32, #tpu.memory_space<vmem>>, %arg3: memref<32x128xbf16, #tpu.memory_space<vmem>>, %arg4: memref<32x128xbf16, #tpu.memory_space<vmem>>, %arg5: memref<1x128xf32, #tpu.memory_space<vmem>>, %arg6: memref<8x128xf32, #tpu.memory_space<vmem>>) attributes {dimension_semantics = [#tpu.dimension_semantics<parallel>], iteration_bounds = array<i64: 1>, scalar_prefetch = 0 : i64, scratch_operands = 0 : i64, tpu.core_type = #tpu.core_type<tc>, window_params = [{transform_indices = @transform_0, window_bounds = array<i64: 8, 32>}, {transform_indices = @transform_1, window_bounds = array<i64: 8, 32>}, {pipeline_mode = #tpu.pipeline_mode<synchronous>, transform_indices = @transform_2, window_bounds = array<i64: 32, 128>}, {pipeline_mode = #tpu.pipeline_mode<synchronous>, transform_indices = @transform_3, window_bounds = array<i64: 32, 128>}, {pipeline_mode = #tpu.pipeline_mode<synchronous>, transform_indices = @transform_4, window_bounds = array<i64: 1, 128>}, {transform_indices = @transform_5, window_bounds = array<i64: 8, 128>}]} {
    %c0 = arith.constant 0 : index
    %c0_0 = arith.constant 0 : index
    %0 = vector.load %arg1[%c0, %c0_0] : memref<8x32xf32, #tpu.memory_space<vmem>>, vector<8x32xf32>
    %1 = arith.truncf %0 : vector<8x32xf32> to vector<8x32xbf16>
    %c0_1 = arith.constant 0 : index
    %c0_2 = arith.constant 0 : index
    %2 = vector.load %arg2[%c0_1, %c0_2] : memref<8x32xf32, #tpu.memory_space<vmem>>, vector<8x32xf32>
    %3 = arith.truncf %2 : vector<8x32xf32> to vector<8x32xbf16>
    %c0_3 = arith.constant 0 : index
    %c0_4 = arith.constant 0 : index
    %4 = vector.load %arg3[%c0_3, %c0_4] : memref<32x128xbf16, #tpu.memory_space<vmem>>, vector<32x128xbf16>
    %cst = arith.constant dense<0.000000e+00> : vector<8x128xf32>
    %5 = tpu.matmul %1, %4, %cst {dimension_numbers = #tpu.dot_dimension_numbers<[1], [0], [0], [1], [0, 0, 1, 1], [], []>} : vector<8x32xbf16>, vector<32x128xbf16>, vector<8x128xf32> -> vector<8x128xf32>
    %c0_5 = arith.constant 0 : index
    %c0_6 = arith.constant 0 : index
    %6 = vector.load %arg4[%c0_5, %c0_6] : memref<32x128xbf16, #tpu.memory_space<vmem>>, vector<32x128xbf16>
    %cst_7 = arith.constant dense<0.000000e+00> : vector<8x128xf32>
    %7 = tpu.matmul %3, %6, %cst_7 {dimension_numbers = #tpu.dot_dimension_numbers<[1], [0], [0], [1], [0, 0, 1, 1], [], []>} : vector<8x32xbf16>, vector<32x128xbf16>, vector<8x128xf32> -> vector<8x128xf32>
    %8 = arith.addf %5, %7 : vector<8x128xf32>
    %c0_8 = arith.constant 0 : index
    %c0_9 = arith.constant 0 : index
    %9 = vector.load %arg5[%c0_8, %c0_9] : memref<1x128xf32, #tpu.memory_space<vmem>>, vector<1x128xf32>
    %10 = vector.broadcast %9 : vector<1x128xf32> to vector<8x128xf32>
    %11 = arith.addf %8, %10 : vector<8x128xf32>
    %cst_10 = arith.constant 0.000000e+00 : f32
    %12 = vector.broadcast %cst_10 : f32 to vector<8x128xf32>
    %13 = arith.maximumf %11, %12 : vector<8x128xf32>
    %c0_11 = arith.constant 0 : index
    %c0_12 = arith.constant 0 : index
    %14 = vector.load %arg6[%c0_11, %c0_12] : memref<8x128xf32, #tpu.memory_space<vmem>>, vector<8x128xf32>
    tpu.vector_store %arg6[%c0_11, %c0_12], %13 {strides = array<i32>} : memref<8x128xf32, #tpu.memory_space<vmem>>, vector<8x128xf32>,
    return
  }
  func.func @transform_0(%arg0: i32) -> (i32, i32) {
    %c0_i32 = arith.constant 0 : i32
    %c0_i32_0 = arith.constant 0 : i32
    return %arg0, %c0_i32 : i32, i32
  }
  func.func @transform_1(%arg0: i32) -> (i32, i32) {
    %c0_i32 = arith.constant 0 : i32
    %c0_i32_0 = arith.constant 0 : i32
    return %arg0, %c0_i32 : i32, i32
  }
  func.func @transform_2(%arg0: i32) -> (i32, i32) {
    %c0_i32 = arith.constant 0 : i32
    %c0_i32_0 = arith.constant 0 : i32
    %c0_i32_1 = arith.constant 0 : i32
    return %c0_i32, %c0_i32_0 : i32, i32
  }
  func.func @transform_3(%arg0: i32) -> (i32, i32) {
    %c0_i32 = arith.constant 0 : i32
    %c0_i32_0 = arith.constant 0 : i32
    %c0_i32_1 = arith.constant 0 : i32
    return %c0_i32, %c0_i32_0 : i32, i32
  }
  func.func @transform_4(%arg0: i32) -> (i32, i32) {
    %c0_i32 = arith.constant 0 : i32
    %c0_i32_0 = arith.constant 0 : i32
    %c0_i32_1 = arith.constant 0 : i32
    return %c0_i32, %c0_i32_0 : i32, i32
  }
  func.func @transform_5(%arg0: i32) -> (i32, i32) {
    %c0_i32 = arith.constant 0 : i32
    %c0_i32_0 = arith.constant 0 : i32
    return %arg0, %c0_i32 : i32, i32
  }
}

</mosaic_0001>

<llo_original>
// kernel: tpu_custom_call.1
$region0: #{tpu_custom_call.1}
  #allocation0 [shape = 'u32[]', space=smem, size = 0x4, offset = 0x4, fixed_abs, tag = 'smem constant byte address 0x4 - core index']
  #allocation1 [shape = 'u32[72,128]{1,0:T(1,128)}', space=vmem, size = 0x9000, scoped, tag = 'internal scratch']
  %s0 = inlined_call_operand.hbm [shape: f32[8,32], index: 0, kind: input, shape index: {}]
  %s1 = inlined_call_operand.hbm [shape: f32[8,32], index: 1, kind: input, shape index: {}]
  %s2 = inlined_call_operand.hbm [shape: bf16[32,128], index: 2, kind: input, shape index: {}]
  %s3 = inlined_call_operand.hbm [shape: bf16[32,128], index: 3, kind: input, shape index: {}]
  %s4 = inlined_call_operand.vmem [shape: f32[1,128], index: 4, kind: input, shape index: {}]
  %s5 = inlined_call_operand.hbm [shape: f32[8,128], index: 5, kind: output, shape index: {}]
  %s6 = sld [smem:[#allocation0]]
  $region46: #{tpu_custom_call.1} parent=0
    _
  %s8 = ssub.s32 1, %s6
  %s9 = scalar_select 0, %s8, %s6
  $region1: #{tpu_custom_call.1} parent=0
    #allocation2 [shape = 'u8[4096]{0}', space=vmem, size = 0x1000, scoped, tag = 'input window, operand 0, single buffered']
    #allocation3 [shape = 's32[1]{0}', space=sflag, size = 0x4, scoped, tag = 'scoped memory for tpu_custom_call.1']
    #allocation4 [shape = 's32[1]{0}', space=sflag, size = 0x4, scoped, tag = 'scoped memory for tpu_custom_call.1']
    #allocation5 [shape = 'u8[4096]{0}', space=vmem, size = 0x1000, scoped, tag = 'input window, operand 1, single buffered']
    #allocation6 [shape = 's32[1]{0}', space=sflag, size = 0x4, scoped, tag = 'scoped memory for tpu_custom_call.1']
    #allocation7 [shape = 'u8[8192]{0}', space=vmem, size = 0x2000, scoped, tag = 'input window, operand 2, single buffered']
    #allocation8 [shape = 'u8[8192]{0}', space=vmem, size = 0x2000, scoped, tag = 'input window, operand 3, single buffered']
    #allocation9 [shape = 's32[1]{0}', space=sflag, size = 0x4, scoped, tag = 'scoped memory for tpu_custom_call.1']
    #allocation10 [shape = 'u8[4096]{0}', space=vmem, size = 0x1000, scoped, tag = 'output window, operand 0, single buffered']
    %10 = vsyncpa [#allocation3], 0
    %11 = vsyncpa [#allocation6], 0
    %12 = vsyncpa [#allocation9], 0
    %13 = vsyncpa [#allocation4], 0
    // Predicated region
    $region2: #{tpu_custom_call.1} parent=1 // pred_check
      _
    $region3: #{tpu_custom_call.1} parent=1 // pred_check_branch
      %15 = sbr.rel (0) target = $region5
    $region4: #{tpu_custom_call.1} parent=1 // pred_region
      %17 = vsyncadd [#allocation3], 0
      %s19 = sshll.u32 %s0, 4
      %s20 = int_to_ptr.hbm [resolvable:$true] %s19
      %s21 = sshll.u32 [#allocation2], 4
      %s22 = int_to_ptr.vmem [resolvable:$true] %s21
      %24 = dma.hbm_to_vmem [thread:$0]  %s20, 128, %s22, [#allocation3]
    $region5: #{tpu_custom_call.1} parent=1 // pred_fallthru
      _
    // Predicated region
    $region6: #{tpu_custom_call.1} parent=1 // pred_check
      _
    $region7: #{tpu_custom_call.1} parent=1 // pred_check_branch
      %26 = sbr.rel (0) target = $region9
    $region8: #{tpu_custom_call.1} parent=1 // pred_region
      %28 = vsyncadd [#allocation6], 0
      %s30 = sshll.u32 %s1, 4
      %s31 = int_to_ptr.hbm [resolvable:$true] %s30
      %s32 = sshll.u32 [#allocation5], 4
      %s33 = int_to_ptr.vmem [resolvable:$true] %s32
      %35 = dma.hbm_to_vmem [thread:$0]  %s31, 128, %s33, [#allocation6]
    $region9: #{tpu_custom_call.1} parent=1 // pred_fallthru
      _
    // Predicated region
    $region10: #{tpu_custom_call.1} parent=1 // pred_check
      _
    $region11: #{tpu_custom_call.1} parent=1 // pred_check_branch
      %37 = sbr.rel (0) target = $region13
    $region12: #{tpu_custom_call.1} parent=1 // pred_region
      %39 = vsyncadd [#allocation6], 0
      %s40 = sshll.u32 %s2, 4
      %s41 = int_to_ptr.hbm [resolvable:$true] %s40
      %s42 = sshll.u32 [#allocation7], 4
      %s43 = int_to_ptr.vmem [resolvable:$true] %s42
      %48 = dma.hbm_to_vmem [thread:$0]  %s41, 256, %s43, [#allocation6], 64, 64, 4
    $region13: #{tpu_custom_call.1} parent=1 // pred_fallthru
      _
    // Predicated region
    $region14: #{tpu_custom_call.1} parent=1 // pred_check
      _
    $region15: #{tpu_custom_call.1} parent=1 // pred_check_branch
      %50 = sbr.rel (0) target = $region17
    $region16: #{tpu_custom_call.1} parent=1 // pred_region
      %52 = vsyncadd [#allocation9], 0
      %s53 = sshll.u32 %s3, 4
      %s54 = int_to_ptr.hbm [resolvable:$true] %s53
      %s55 = sshll.u32 [#allocation8], 4
      %s56 = int_to_ptr.vmem [resolvable:$true] %s55
      %61 = dma.hbm_to_vmem [thread:$0]  %s54, 256, %s56, [#allocation9], 64, 64, 4
    $region17: #{tpu_custom_call.1} parent=1 // pred_fallthru
      _
    // Predicated region
    $region18: #{tpu_custom_call.1} parent=1 // pred_check
      _
    $region19: #{tpu_custom_call.1} parent=1 // pred_check_branch
      %63 = sbr.rel (0) target = $region21
    $region20: #{tpu_custom_call.1} parent=1 // pred_region
      _
    $region21: #{tpu_custom_call.1} parent=1 // pred_fallthru
      _
    // Predicated region
    $region22: #{tpu_custom_call.1} parent=1 // pred_check
      _
    $region23: #{tpu_custom_call.1} parent=1 // pred_check_branch
      %65 = sbr.rel (0) target = $region25
    $region24: #{tpu_custom_call.1} parent=1 // pred_region
      %67 = dma.done [#allocation3], 128
    $region25: #{tpu_custom_call.1} parent=1 // pred_fallthru
      _
    // Predicated region
    $region26: #{tpu_custom_call.1} parent=1 // pred_check
      _
    $region27: #{tpu_custom_call.1} parent=1 // pred_check_branch
      %69 = sbr.rel (0) target = $region29
    $region28: #{tpu_custom_call.1} parent=1 // pred_region
      %71 = dma.done [#allocation6], 128
    $region29: #{tpu_custom_call.1} parent=1 // pred_fallthru
      _
    // Predicated region
    $region30: #{tpu_custom_call.1} parent=1 // pred_check
      _
    $region31: #{tpu_custom_call.1} parent=1 // pred_check_branch
      %73 = sbr.rel (0) target = $region33
    $region32: #{tpu_custom_call.1} parent=1 // pred_region
      %75 = dma.done [#allocation6], 256
    $region33: #{tpu_custom_call.1} parent=1 // pred_fallthru
      _
    // Predicated region
    $region34: #{tpu_custom_call.1} parent=1 // pred_check
      _
    $region35: #{tpu_custom_call.1} parent=1 // pred_check_branch
      %77 = sbr.rel (0) target = $region37
    $region36: #{tpu_custom_call.1} parent=1 // pred_region
      %79 = dma.done [#allocation9], 256
    $region37: #{tpu_custom_call.1} parent=1 // pred_fallthru
      _
    %v81 = vld [vmem:[#allocation2] sm:$0xff]
    %v82 = vpack.c.bf16 %v81, %v81
    %v83 = vld [vmem:[#allocation5] sm:$0xff]
    %v84 = vpack.c.bf16 %v83, %v83
    %v85 = vld [vmem:[#allocation7] sm:$0xf]
    %v86 = vld [vmem:[#allocation7 + $0x4] sm:$0xf]
    %v87 = vld [vmem:[#allocation7 + $0x8] sm:$0xf]
    %v88 = vld [vmem:[#allocation7 + $0xc] sm:$0xf]
    %v89 = vld [vmem:[#allocation8] sm:$0xf]
    %v90 = vld [vmem:[#allocation8 + $0x4] sm:$0xf]
    %v91 = vld [vmem:[#allocation8 + $0x8] sm:$0xf]
    %v92 = vld [vmem:[#allocation8 + $0xc] sm:$0xf]
    %v97 = vunpack.c.l.b16 %v89
    %v98 = vunpack.c.l.b16 %v90
    %v99 = vunpack.c.l.b16 %v91
    %v100 = vunpack.c.l.b16 %v92
    %v101 = vpack.c.b16 %v98, %v97
    %v102 = vpack.c.b16 %v100, %v99
    %vm105 = vcmask 261120
    %v107 = vsel %vm105, %v84, 0
    %109 = vmatpush.bf16.msra.mxu0 0
    %110 = vmatpush.bf16.msra.mxu0 0
    %111 = vmatpush.bf16.msra.mxu0 0
    %112 = vmatpush.bf16.msra.mxu0 0
    %113 = vmatpush.bf16.msra.mxu0 0
    %114 = vmatpush.bf16.msra.mxu0 0
    %115 = vmatpush.bf16.msra.mxu0 %v102
    %116 = vmatpush.bf16.msra.mxu0 %v101
    %117 = vmatmul.bf16.gmra.mxu0 %v107
    %v118 = vpop.f32.mrf.mxu0
    %v119 = vadd.f32 0.0, %v118
    %v120 = vpop.f32.mrf.mxu0
    %121 = vdwg.mxu0
    %v126 = vunpack.c.l.b16 %v85
    %v127 = vunpack.c.l.b16 %v86
    %v128 = vunpack.c.l.b16 %v87
    %v129 = vunpack.c.l.b16 %v88
    %v130 = vpack.c.b16 %v127, %v126
    %v131 = vpack.c.b16 %v129, %v128
    %v135 = vsel %vm105, %v82, 0
    %137 = vmatpush.bf16.msra.mxu0 0
    %138 = vmatpush.bf16.msra.mxu0 0
    %139 = vmatpush.bf16.msra.mxu0 0
    %140 = vmatpush.bf16.msra.mxu0 0
    %141 = vmatpush.bf16.msra.mxu0 0
    %142 = vmatpush.bf16.msra.mxu0 0
    %143 = vmatpush.bf16.msra.mxu0 %v131
    %144 = vmatpush.bf16.msra.mxu0 %v130
    %145 = vmatmul.bf16.gmra.mxu0 %v135
    %v146 = vpop.f32.mrf.mxu0
    %v147 = vadd.f32 %v119, %v146
    %v148 = vpop.f32.mrf.mxu0
    %149 = vdwg.mxu0
    %v150 = vld [vmem:[%s4] sm:$0x1]
    %v152 = vperm.slane %v150, 0
    %v154 = vadd.f32 %v147, %v152
    %v155 = vmax.f32 %v154, 0.0
    %156 = vst [vmem:[#allocation10] sm:$0xff] %v155
    // Predicated region
    $region38: #{tpu_custom_call.1} parent=1 // pred_check
      _
    $region39: #{tpu_custom_call.1} parent=1 // pred_check_branch
      %158 = sbr.rel (0) target = $region41
    $region40: #{tpu_custom_call.1} parent=1 // pred_region
      %160 = vsyncadd [#allocation4], 0
      %s162 = sshll.u32 [#allocation10], 4
      %s163 = int_to_ptr.vmem [resolvable:$true] %s162
      %s164 = sshll.u32 %s5, 4
      %s165 = int_to_ptr.hbm [resolvable:$true] %s164
      %167 = dma.vmem_to_hbm [thread:$0]  %s163, 128, %s165, [#allocation4]
    $region41: #{tpu_custom_call.1} parent=1 // pred_fallthru
      _
    // Predicated region
    $region42: #{tpu_custom_call.1} parent=1 // pred_check
      _
    $region43: #{tpu_custom_call.1} parent=1 // pred_check_branch
      %169 = sbr.rel (0) target = $region45
    $region44: #{tpu_custom_call.1} parent=1 // pred_region
      %171 = dma.done [#allocation4], 128
    $region45: #{tpu_custom_call.1} parent=1 // pred_fallthru
      _
    %172 = vsyncpa [#allocation3], 1
    %173 = vsyncpa [#allocation6], 1
    %174 = vsyncpa [#allocation9], 1
    %175 = vsyncpa [#allocation4], 1

</llo_original>
